<compile_context>
chip_gen: v7x
topology: tpu7x:2x2x1
jax: 0.10.0
libtpu: 0.0.40
codegen_flags: <defaults>
</compile_context>

<pallas_src>
import jax
import jax.numpy as jnp
import numpy as np
from jax.experimental import pallas as pl
from jax.experimental.pallas import tpu as pltpu

# ---------------- configuration (small, consistent with the module) ----------------
B = 2          # batch
T = 8          # seq_len
D = 32         # hidden_dim
H = 4          # num_heads
E = D // H     # head_dim
M = 4          # num_modes (mode_selection='lowest' -> modes [0..M-1], M <= T//2+1)
CM = 2         # channel_multiplier
DC = CM * D    # hidden_conv_dim
TD = T * D     # flattened (time, hidden) width = 256
TDC = T * DC   # flattened (time, conv hidden) width = 512

WEIGHT_DTYPE = jnp.bfloat16          # folded operators live in bf16 (halves weight DMA)
VMEM_WEIGHT_BUDGET = 16 * 1024 * 1024  # conservative guard (v7x: 64 MiB phys / 32 MiB scoped)


def make_dft_mats(seq_len: int, num_modes: int):
    """Real (co)sine DFT matrices for rfft / irfft restricted to the selected modes."""
    t = np.arange(seq_len)
    modes = np.arange(num_modes)
    ang = 2.0 * np.pi * np.outer(modes, t) / seq_len            # (M, T)
    fc = np.cos(ang).astype(np.float32)                         # (M, T)  rfft real part
    fs = np.sin(ang).astype(np.float32)                         # (M, T)  rfft -imag part
    # irfft(n=T) weights: DC and Nyquist get weight 1, other bins weight 2, all scaled by 1/T
    w = np.where((modes == 0) | (modes == seq_len // 2), 1.0, 2.0) / seq_len
    cic = (np.cos(ang).T * w).astype(np.float32)                # (T, M)
    cis = (np.sin(ang).T * w).astype(np.float32)                # (T, M)
    return (jnp.asarray(fc), jnp.asarray(fs), jnp.asarray(cic), jnp.asarray(cis))


# -------------------------- host-side operator folding -----------------------------
def fold_params(params):
    """Fold projection + FEB-f (DFT, complex weights, inverse DFT) + 1x1 convs into
    flat-layout operators acting on (rows, T*D) activations.  Weight operators are
    returned in bf16; all folding arithmetic is done in f32."""
    wp, bp, wre, wim, fc, fs, cic, cis, w1, w2 = params
    eye_t = jnp.eye(T, dtype=jnp.float32)
    eye_h = jnp.eye(H, dtype=jnp.float32)

    # per-head folded FEB-f operator: kh[h, s, e, t, o] maps q[b, s, h, e] -> attn[b, t, h, o]
    kh = (jnp.einsum('tm,ms,hmeo->hseto', cic, fc, wre)
          + jnp.einsum('tm,ms,hmeo->hseto', cic, fs, wim)
          - jnp.einsum('tm,ms,hmeo->hseto', cis, fc, wim)
          + jnp.einsum('tm,ms,hmeo->hseto', cis, fs, wre))
    # block-diagonal over heads -> (T*D, T*D), rows index (s, h, e), cols index (t, h, o)
    k_big = jnp.einsum('hseto,hg->shetgo', kh, eye_h).reshape(TD, TD)

    # SingleMultiheadProjection Linear(D, D): block-diagonal over time, then fused with k_big.
    wp_big = jnp.einsum('ji,st->sitj', wp, eye_t).reshape(TD, TD)
    a_op = wp_big @ k_big                                        # (T*D, T*D)
    b_op = jnp.tile(bp, (1, T)) @ k_big                          # (1, T*D)  bias row (f32)

    # 1x1 convs (bias-free), block-diagonal over time.
    w1_big = jnp.einsum('ci,st->sitc', w1, eye_t).reshape(TD, TDC)   # (T*D, T*DC)
    w2_big = jnp.einsum('dc,st->sctd', w2, eye_t).reshape(TDC, TD)   # (T*DC, T*D)

    # Guard the folded-dense path against the VMEM ceiling (operators grow as (T*D)^2).
    folded_bytes = (TD * TD + 2 * TD * TDC) * jnp.dtype(WEIGHT_DTYPE).itemsize
    if folded_bytes > VMEM_WEIGHT_BUDGET:
        # TODO(synk): implement the factored DFT->mode-weight->iDFT tiled path for large T*D.
        raise NotImplementedError("folded dense operator exceeds VMEM budget")

    return (a_op.astype(WEIGHT_DTYPE), b_op.astype(jnp.float32),
            w1_big.astype(WEIGHT_DTYPE), w2_big.astype(WEIGHT_DTYPE))


# --------------------------------- Pallas kernel -----------------------------------
def fedformer_kernel(x_ref, a_ref, ba_ref, w1_ref, w2_ref, out_ref):
    x = x_ref[...]                                               # (rows, T*D) f32, lane-dense
    # projection + FEB-f folded into a single bf16 MXU matmul, f32 accumulation
    attn = jnp.dot(x.astype(WEIGHT_DTYPE), a_ref[...],
                   preferred_element_type=jnp.float32) + ba_ref[...]
    x1 = x + attn                                                # residual 1 (f32, dropout=id)
    # feed-forward: 1x1 conv -> ReLU -> 1x1 conv (bias-free), residual 2
    y = jnp.maximum(jnp.dot(x1.astype(WEIGHT_DTYPE), w1_ref[...],
                            preferred_element_type=jnp.float32), 0.0)
    z = jnp.dot(y.astype(WEIGHT_DTYPE), w2_ref[...],
                preferred_element_type=jnp.float32)
    out_ref[...] = (x1 + z).astype(out_ref.dtype)


def fedformer_layer(x, folded):
    """x: (batch, T, D) f32 -> (batch, T, D) f32."""
    a_op, b_op, w1_big, w2_big = folded
    b = x.shape[0]
    xf = x.reshape(b, TD).astype(jnp.float32)                    # lane-dense activation slab

    # Row tile: multiple of 8 sublanes; large batches tile along a "parallel" grid axis
    # (sharded across the two TensorCores on v7x); small batches are zero-padded to 8 rows.
    row_tile = min(max(8, pl.next_power_of_2(b)), 256)
    b_pad = pl.cdiv(b, row_tile) * row_tile
    if b_pad != b:
        xf = jnp.pad(xf, ((0, b_pad - b), (0, 0)))
    grid = (b_pad // row_tile,)

    wbytes = jnp.dtype(WEIGHT_DTYPE).itemsize
    flops = 2 * b_pad * TD * TD + 4 * b_pad * TD * TDC
    bytes_accessed = (wbytes * (TD * TD + 2 * TD * TDC)   # weights (fetched once)
                      + 4 * TD                            # bias row
                      + 4 * 2 * b_pad * TD)               # activations in/out

    out = pl.pallas_call(
        fedformer_kernel,
        grid=grid,
        in_specs=[
            pl.BlockSpec((row_tile, TD), lambda i: (i, 0)),      # activations: tiled over rows
            pl.BlockSpec((TD, TD), lambda i: (0, 0)),            # A      (resident, bf16)
            pl.BlockSpec((1, TD), lambda i: (0, 0)),             # bias   (f32)
            pl.BlockSpec((TD, TDC), lambda i: (0, 0)),           # W1b    (resident, bf16)
            pl.BlockSpec((TDC, TD), lambda i: (0, 0)),           # W2b    (resident, bf16)
        ],
        out_specs=pl.BlockSpec((row_tile, TD), lambda i: (i, 0)),
        out_shape=jax.ShapeDtypeStruct((b_pad, TD), jnp.float32),
        compiler_params=pltpu.CompilerParams(dimension_semantics=("parallel",)),
        cost_estimate=pl.CostEstimate(
            flops=flops, transcendentals=0, bytes_accessed=bytes_accessed),
    )(xf, a_op, b_op, w1_big, w2_big)
    return out[:b].reshape(b, T, D)


# ------------------------------ pure-JAX reference ----------------------------------
def ref_forward(x, params):
    wp, bp, wre, wim, fc, fs, cic, cis, w1, w2 = params
    proj = x @ wp.T + bp[0]
    q = proj.reshape(B, T, H, E)
    xr = jnp.einsum('mt,bthe->bhme', fc, q)
    xi = -jnp.einsum('mt,bthe->bhme', fs, q)
    outr = jnp.einsum('bhme,hmeo->bhmo', xr, wre) - jnp.einsum('bhme,hmeo->bhmo', xi, wim)
    outi = jnp.einsum('bhme,hmeo->bhmo', xr, wim) + jnp.einsum('bhme,hmeo->bhmo', xi, wre)
    y = jnp.einsum('tm,bhmo->btho', cic, outr) - jnp.einsum('tm,bhmo->btho', cis, outi)
    attn = y.reshape(B, T, D)
    x1 = x + attn
    ff = jnp.maximum(x1 @ w1.T, 0.0)
    return x1 + ff @ w2.T


if __name__ == "__main__":
    key = jax.random.PRNGKey(0)
    ks = jax.random.split(key, 8)

    x = jax.random.normal(ks[0], (B, T, D), jnp.float32)

    # deterministic parameter init (shapes from the module's __init__)
    wp = jax.random.normal(ks[1], (D, D), jnp.float32) * 0.1            # projection Linear weight
    bp = jax.random.normal(ks[2], (1, D), jnp.float32) * 0.1            # projection Linear bias
    scale = 1.0 / (E * E)
    wre = jax.random.uniform(ks[3], (H, M, E, E), jnp.float32) * scale  # complex weights (real)
    wim = jax.random.uniform(ks[4], (H, M, E, E), jnp.float32) * scale  # complex weights (imag)
    w1 = jax.random.normal(ks[5], (DC, D), jnp.float32) * 0.1           # conv_1 (out, in), k=1
    w2 = jax.random.normal(ks[6], (D, DC), jnp.float32) * 0.1           # conv_2 (out, in), k=1

    fc, fs, cic, cis = make_dft_mats(T, M)
    params = (wp, bp, wre, wim, fc, fs, cic, cis, w1, w2)

    folded = tuple(jax.block_until_ready(t) for t in fold_params(params))

    out = fedformer_layer(x, folded)
    out = jax.block_until_ready(out)

    ref = jax.block_until_ready(ref_forward(x, params))
    # bf16 weight (and matmul-input) quantization -> looser tolerance than the f32 version.
    np.testing.assert_allclose(np.asarray(out), np.asarray(ref), rtol=2e-2, atol=1e-2)

    print("KERNEL_OK")
</pallas_src>

<mosaic_0001>
module attributes {stable_mosaic.version = 11 : i64} {
  func.func @fedformer_kernel(%arg0: i32, %arg1: memref<8x256xf32, #tpu.memory_space<vmem>>, %arg2: memref<256x256xbf16, #tpu.memory_space<vmem>>, %arg3: memref<1x256xf32, #tpu.memory_space<vmem>>, %arg4: memref<256x512xbf16, #tpu.memory_space<vmem>>, %arg5: memref<512x256xbf16, #tpu.memory_space<vmem>>, %arg6: memref<8x256xf32, #tpu.memory_space<vmem>>) attributes {dimension_semantics = [#tpu.dimension_semantics<parallel>], iteration_bounds = array<i64: 1>, scalar_prefetch = 0 : i64, scratch_operands = 0 : i64, tpu.core_type = #tpu.core_type<tc>, window_params = [{transform_indices = @transform_0, window_bounds = array<i64: 8, 256>}, {pipeline_mode = #tpu.pipeline_mode<synchronous>, transform_indices = @transform_1, window_bounds = array<i64: 256, 256>}, {pipeline_mode = #tpu.pipeline_mode<synchronous>, transform_indices = @transform_2, window_bounds = array<i64: 1, 256>}, {pipeline_mode = #tpu.pipeline_mode<synchronous>, transform_indices = @transform_3, window_bounds = array<i64: 256, 512>}, {pipeline_mode = #tpu.pipeline_mode<synchronous>, transform_indices = @transform_4, window_bounds = array<i64: 512, 256>}, {transform_indices = @transform_5, window_bounds = array<i64: 8, 256>}]} {
    %c0 = arith.constant 0 : index
    %c0_0 = arith.constant 0 : index
    %0 = vector.load %arg1[%c0, %c0_0] : memref<8x256xf32, #tpu.memory_space<vmem>>, vector<8x256xf32>
    %1 = arith.truncf %0 : vector<8x256xf32> to vector<8x256xbf16>
    %c0_1 = arith.constant 0 : index
    %c0_2 = arith.constant 0 : index
    %2 = vector.load %arg2[%c0_1, %c0_2] : memref<256x256xbf16, #tpu.memory_space<vmem>>, vector<256x256xbf16>
    %cst = arith.constant dense<0.000000e+00> : vector<8x256xf32>
    %3 = tpu.matmul %1, %2, %cst {dimension_numbers = #tpu.dot_dimension_numbers<[1], [0], [0], [1], [0, 0, 1, 1], [], []>} : vector<8x256xbf16>, vector<256x256xbf16>, vector<8x256xf32> -> vector<8x256xf32>
    %c0_3 = arith.constant 0 : index
    %c0_4 = arith.constant 0 : index
    %4 = vector.load %arg3[%c0_3, %c0_4] : memref<1x256xf32, #tpu.memory_space<vmem>>, vector<1x256xf32>
    %5 = vector.broadcast %4 : vector<1x256xf32> to vector<8x256xf32>
    %6 = arith.addf %3, %5 : vector<8x256xf32>
    %7 = arith.addf %0, %6 : vector<8x256xf32>
    %8 = arith.truncf %7 : vector<8x256xf32> to vector<8x256xbf16>
    %c0_5 = arith.constant 0 : index
    %c0_6 = arith.constant 0 : index
    %9 = vector.load %arg4[%c0_5, %c0_6] : memref<256x512xbf16, #tpu.memory_space<vmem>>, vector<256x512xbf16>
    %cst_7 = arith.constant dense<0.000000e+00> : vector<8x512xf32>
    %10 = tpu.matmul %8, %9, %cst_7 {dimension_numbers = #tpu.dot_dimension_numbers<[1], [0], [0], [1], [0, 0, 1, 1], [], []>} : vector<8x256xbf16>, vector<256x512xbf16>, vector<8x512xf32> -> vector<8x512xf32>
    %cst_8 = arith.constant 0.000000e+00 : f32
    %11 = vector.broadcast %cst_8 : f32 to vector<8x512xf32>
    %12 = arith.maximumf %10, %11 : vector<8x512xf32>
    %13 = arith.truncf %12 : vector<8x512xf32> to vector<8x512xbf16>
    %c0_9 = arith.constant 0 : index
    %c0_10 = arith.constant 0 : index
    %14 = vector.load %arg5[%c0_9, %c0_10] : memref<512x256xbf16, #tpu.memory_space<vmem>>, vector<512x256xbf16>
    %cst_11 = arith.constant dense<0.000000e+00> : vector<8x256xf32>
    %15 = tpu.matmul %13, %14, %cst_11 {dimension_numbers = #tpu.dot_dimension_numbers<[1], [0], [0], [1], [0, 0, 1, 1], [], []>} : vector<8x512xbf16>, vector<512x256xbf16>, vector<8x256xf32> -> vector<8x256xf32>
    %16 = arith.addf %7, %15 : vector<8x256xf32>
    %c0_12 = arith.constant 0 : index
    %c0_13 = arith.constant 0 : index
    %17 = vector.load %arg6[%c0_12, %c0_13] : memref<8x256xf32, #tpu.memory_space<vmem>>, vector<8x256xf32>
    tpu.vector_store %arg6[%c0_12, %c0_13], %16 {strides = array<i32>} : memref<8x256xf32, #tpu.memory_space<vmem>>, vector<8x256xf32>,
    return
  }
  func.func @transform_0(%arg0: i32) -> (i32, i32) {
    %c0_i32 = arith.constant 0 : i32
    %c0_i32_0 = arith.constant 0 : i32
    return %arg0, %c0_i32 : i32, i32
  }
  func.func @transform_1(%arg0: i32) -> (i32, i32) {
    %c0_i32 = arith.constant 0 : i32
    %c0_i32_0 = arith.constant 0 : i32
    %c0_i32_1 = arith.constant 0 : i32
    return %c0_i32, %c0_i32_0 : i32, i32
  }
  func.func @transform_2(%arg0: i32) -> (i32, i32) {
    %c0_i32 = arith.constant 0 : i32
    %c0_i32_0 = arith.constant 0 : i32
    %c0_i32_1 = arith.constant 0 : i32
    return %c0_i32, %c0_i32_0 : i32, i32
  }
  func.func @transform_3(%arg0: i32) -> (i32, i32) {
    %c0_i32 = arith.constant 0 : i32
    %c0_i32_0 = arith.constant 0 : i32
    %c0_i32_1 = arith.constant 0 : i32
    return %c0_i32, %c0_i32_0 : i32, i32
  }
  func.func @transform_4(%arg0: i32) -> (i32, i32) {
    %c0_i32 = arith.constant 0 : i32
    %c0_i32_0 = arith.constant 0 : i32
    %c0_i32_1 = arith.constant 0 : i32
    return %c0_i32, %c0_i32_0 : i32, i32
  }
  func.func @transform_5(%arg0: i32) -> (i32, i32) {
    %c0_i32 = arith.constant 0 : i32
    %c0_i32_0 = arith.constant 0 : i32
    return %arg0, %c0_i32 : i32, i32
  }
}

</mosaic_0001>

<llo_original>
// kernel: tpu_custom_call.1
$region0: #{tpu_custom_call.1}
  #allocation0 [shape = 'u32[]', space=smem, size = 0x4, offset = 0x4, fixed_abs, tag = 'smem constant byte address 0x4 - core index']
  #allocation1 [shape = 'u32[144,128]{1,0:T(1,128)}', space=vmem, size = 0x12000, scoped, tag = 'internal scratch']
  %s0 = inlined_call_operand.hbm [shape: f32[8,256], index: 0, kind: input, shape index: {}]
  %s1 = inlined_call_operand.hbm [shape: bf16[256,256], index: 1, kind: input, shape index: {}]
  %s2 = inlined_call_operand.vmem [shape: f32[1,256], index: 2, kind: input, shape index: {}]
  %s3 = inlined_call_operand.hbm [shape: bf16[256,512], index: 3, kind: input, shape index: {}]
  %s4 = inlined_call_operand.hbm [shape: bf16[512,256], index: 4, kind: input, shape index: {}]
  %s5 = inlined_call_operand.hbm [shape: f32[8,256], index: 5, kind: output, shape index: {}]
  %s6 = sld [smem:[#allocation0]]
  $region46: #{tpu_custom_call.1} parent=0
    _
  %s8 = ssub.s32 1, %s6
  %s9 = scalar_select 0, %s8, %s6
  $region1: #{tpu_custom_call.1} parent=0
    #allocation2 [shape = 'u8[8192]{0}', space=vmem, size = 0x2000, scoped, tag = 'input window, operand 0, single buffered']
    #allocation3 [shape = 's32[1]{0}', space=sflag, size = 0x4, scoped, tag = 'scoped memory for tpu_custom_call.1']
    #allocation4 [shape = 's32[1]{0}', space=sflag, size = 0x4, scoped, tag = 'scoped memory for tpu_custom_call.1']
    #allocation5 [shape = 'u8[131072]{0}', space=vmem, size = 0x20000, scoped, tag = 'input window, operand 1, single buffered']
    #allocation6 [shape = 's32[1]{0}', space=sflag, size = 0x4, scoped, tag = 'scoped memory for tpu_custom_call.1']
    #allocation7 [shape = 'u8[262144]{0}', space=vmem, size = 0x40000, scoped, tag = 'input window, operand 3, single buffered']
    #allocation8 [shape = 'u8[262144]{0}', space=vmem, size = 0x40000, scoped, tag = 'input window, operand 4, single buffered']
    #allocation9 [shape = 's32[1]{0}', space=sflag, size = 0x4, scoped, tag = 'scoped memory for tpu_custom_call.1']
    #allocation10 [shape = 'u8[8192]{0}', space=vmem, size = 0x2000, scoped, tag = 'output window, operand 0, single buffered']
    %10 = vsyncpa [#allocation3], 0
    %11 = vsyncpa [#allocation6], 0
    %12 = vsyncpa [#allocation9], 0
    %13 = vsyncpa [#allocation4], 0
    // Predicated region
    $region2: #{tpu_custom_call.1} parent=1 // pred_check
      _
    $region3: #{tpu_custom_call.1} parent=1 // pred_check_branch
      %15 = sbr.rel (0) target = $region5
    $region4: #{tpu_custom_call.1} parent=1 // pred_region
      %s17 = ssub.s32 256, 256
      %18 = vsyncadd [#allocation3], %s17
      %s20 = sshll.u32 [#allocation2], 4
      %s21 = int_to_ptr.vmem [resolvable:$true] %s20
      %23 = dma.hbm_to_vmem [thread:$0]  %s0, 256, %s21, [#allocation3]
    $region5: #{tpu_custom_call.1} parent=1 // pred_fallthru
      _
    // Predicated region
    $region6: #{tpu_custom_call.1} parent=1 // pred_check
      _
    $region7: #{tpu_custom_call.1} parent=1 // pred_check_branch
      %25 = sbr.rel (0) target = $region9
    $region8: #{tpu_custom_call.1} parent=1 // pred_region
      %s27 = ssub.s32 4096, 4096
      %28 = vsyncadd [#allocation6], %s27
      %s29 = sshll.u32 [#allocation5], 4
      %s30 = int_to_ptr.vmem [resolvable:$true] %s29
      %35 = dma.hbm_to_vmem [thread:$0]  %s1, 4096, %s30, [#allocation6], 128, 128, 8
    $region9: #{tpu_custom_call.1} parent=1 // pred_fallthru
      _
    // Predicated region
    $region10: #{tpu_custom_call.1} parent=1 // pred_check
      _
    $region11: #{tpu_custom_call.1} parent=1 // pred_check_branch
      %37 = sbr.rel (0) target = $region13
    $region12: #{tpu_custom_call.1} parent=1 // pred_region
      _
    $region13: #{tpu_custom_call.1} parent=1 // pred_fallthru
      _
    // Predicated region
    $region14: #{tpu_custom_call.1} parent=1 // pred_check
      _
    $region15: #{tpu_custom_call.1} parent=1 // pred_check_branch
      %39 = sbr.rel (0) target = $region17
    $region16: #{tpu_custom_call.1} parent=1 // pred_region
      %s41 = ssub.s32 8192, 8192
      %42 = vsyncadd [#allocation6], %s41
      %s43 = sshll.u32 [#allocation7], 4
      %s44 = int_to_ptr.vmem [resolvable:$true] %s43
      %49 = dma.hbm_to_vmem [thread:$0]  %s3, 8192, %s44, [#allocation6], 256, 256, 16
    $region17: #{tpu_custom_call.1} parent=1 // pred_fallthru
      _
    // Predicated region
    $region18: #{tpu_custom_call.1} parent=1 // pred_check
      _
    $region19: #{tpu_custom_call.1} parent=1 // pred_check_branch
      %51 = sbr.rel (0) target = $region21
    $region20: #{tpu_custom_call.1} parent=1 // pred_region
      %s53 = ssub.s32 8192, 8192
      %54 = vsyncadd [#allocation9], %s53
      %s55 = sshll.u32 [#allocation8], 4
      %s56 = int_to_ptr.vmem [resolvable:$true] %s55
      %61 = dma.hbm_to_vmem [thread:$0]  %s4, 8192, %s56, [#allocation9], 128, 128, 8
    $region21: #{tpu_custom_call.1} parent=1 // pred_fallthru
      _
    // Predicated region
    $region22: #{tpu_custom_call.1} parent=1 // pred_check
      _
    $region23: #{tpu_custom_call.1} parent=1 // pred_check_branch
      %63 = sbr.rel (0) target = $region25
    $region24: #{tpu_custom_call.1} parent=1 // pred_region
      %64 = dma.done [#allocation3], 256
    $region25: #{tpu_custom_call.1} parent=1 // pred_fallthru
      _
    // Predicated region
    $region26: #{tpu_custom_call.1} parent=1 // pred_check
      _
    $region27: #{tpu_custom_call.1} parent=1 // pred_check_branch
      %66 = sbr.rel (0) target = $region29
    $region28: #{tpu_custom_call.1} parent=1 // pred_region
      %67 = dma.done [#allocation6], 4096
    $region29: #{tpu_custom_call.1} parent=1 // pred_fallthru
      _
    // Predicated region
    $region30: #{tpu_custom_call.1} parent=1 // pred_check
      _
    $region31: #{tpu_custom_call.1} parent=1 // pred_check_branch
      %69 = sbr.rel (0) target = $region33
    $region32: #{tpu_custom_call.1} parent=1 // pred_region
      %70 = dma.done [#allocation6], 8192
    $region33: #{tpu_custom_call.1} parent=1 // pred_fallthru
      _
    // Predicated region
    $region34: #{tpu_custom_call.1} parent=1 // pred_check
      _
    $region35: #{tpu_custom_call.1} parent=1 // pred_check_branch
      %72 = sbr.rel (0) target = $region37
    $region36: #{tpu_custom_call.1} parent=1 // pred_region
      %73 = dma.done [#allocation9], 8192
    $region37: #{tpu_custom_call.1} parent=1 // pred_fallthru
      _
    %v74 = vld [vmem:[#allocation2] sm:$0xff]
    %v75 = vld [vmem:[#allocation2 + $0x8] sm:$0xff]
    %v76 = vpack.c.bf16 %v74, %v74
    %v77 = vpack.c.bf16 %v75, %v75
    %v78 = vld [vmem:[#allocation5] sm:$0xff]
    %v79 = vld [vmem:[#allocation5 + $0x8] sm:$0xff]
    %v80 = vld [vmem:[#allocation5 + $0x10] sm:$0xff]
    %v81 = vld [vmem:[#allocation5 + $0x18] sm:$0xff]
    %v82 = vld [vmem:[#allocation5 + $0x20] sm:$0xff]
    %v83 = vld [vmem:[#allocation5 + $0x28] sm:$0xff]
    %v84 = vld [vmem:[#allocation5 + $0x30] sm:$0xff]
    %v85 = vld [vmem:[#allocation5 + $0x38] sm:$0xff]
    %v86 = vld [vmem:[#allocation5 + $0x40] sm:$0xff]
    %v87 = vld [vmem:[#allocation5 + $0x48] sm:$0xff]
    %v88 = vld [vmem:[#allocation5 + $0x50] sm:$0xff]
    %v89 = vld [vmem:[#allocation5 + $0x58] sm:$0xff]
    %v90 = vld [vmem:[#allocation5 + $0x60] sm:$0xff]
    %v91 = vld [vmem:[#allocation5 + $0x68] sm:$0xff]
    %v92 = vld [vmem:[#allocation5 + $0x70] sm:$0xff]
    %v93 = vld [vmem:[#allocation5 + $0x78] sm:$0xff]
    %v94 = vld [vmem:[#allocation5 + $0x80] sm:$0xff]
    %v95 = vld [vmem:[#allocation5 + $0x88] sm:$0xff]
    %v96 = vld [vmem:[#allocation5 + $0x90] sm:$0xff]
    %v97 = vld [vmem:[#allocation5 + $0x98] sm:$0xff]
    %v98 = vld [vmem:[#allocation5 + $0xa0] sm:$0xff]
    %v99 = vld [vmem:[#allocation5 + $0xa8] sm:$0xff]
    %v100 = vld [vmem:[#allocation5 + $0xb0] sm:$0xff]
    %v101 = vld [vmem:[#allocation5 + $0xb8] sm:$0xff]
    %v102 = vld [vmem:[#allocation5 + $0xc0] sm:$0xff]
    %v103 = vld [vmem:[#allocation5 + $0xc8] sm:$0xff]
    %v104 = vld [vmem:[#allocation5 + $0xd0] sm:$0xff]
    %v105 = vld [vmem:[#allocation5 + $0xd8] sm:$0xff]
    %v106 = vld [vmem:[#allocation5 + $0xe0] sm:$0xff]
    %v107 = vld [vmem:[#allocation5 + $0xe8] sm:$0xff]
    %v108 = vld [vmem:[#allocation5 + $0xf0] sm:$0xff]
    %v109 = vld [vmem:[#allocation5 + $0xf8] sm:$0xff]
    %v110 = vld [vmem:[%s2] sm:$0x3]
    %v112 = vlaneseq
    %v113 = vshrl.u32 %v112, 7
    %v114 = vsub.s32 0, %v113
    %v115 = vrot.slane %v110, %v114
    %v116 = vlaneseq
    %v117 = vshrl.u32 %v116, 7
    %v118 = vsub.s32 1, %v117
    %v119 = vrot.slane %v110, %v118
    %v154 = vunpack.c.l.b16 %v78
    %v155 = vunpack.c.h.b16 %v78
    %v156 = vunpack.c.l.b16 %v79
    %v157 = vunpack.c.h.b16 %v79
    %v158 = vunpack.c.l.b16 %v80
    %v159 = vunpack.c.h.b16 %v80
    %v160 = vunpack.c.l.b16 %v81
    %v161 = vunpack.c.h.b16 %v81
    %v162 = vunpack.c.l.b16 %v82
    %v163 = vunpack.c.h.b16 %v82
    %v164 = vunpack.c.l.b16 %v83
    %v165 = vunpack.c.h.b16 %v83
    %v166 = vunpack.c.l.b16 %v84
    %v167 = vunpack.c.h.b16 %v84
    %v168 = vunpack.c.l.b16 %v85
    %v169 = vunpack.c.h.b16 %v85
    %v170 = vunpack.c.l.b16 %v86
    %v171 = vunpack.c.h.b16 %v86
    %v172 = vunpack.c.l.b16 %v87
    %v173 = vunpack.c.h.b16 %v87
    %v174 = vunpack.c.l.b16 %v88
    %v175 = vunpack.c.h.b16 %v88
    %v176 = vunpack.c.l.b16 %v89
    %v177 = vunpack.c.h.b16 %v89
    %v178 = vunpack.c.l.b16 %v90
    %v179 = vunpack.c.h.b16 %v90
    %v180 = vunpack.c.l.b16 %v91
    %v181 = vunpack.c.h.b16 %v91
    %v182 = vunpack.c.l.b16 %v92
    %v183 = vunpack.c.h.b16 %v92
    %v184 = vunpack.c.l.b16 %v93
    %v185 = vunpack.c.h.b16 %v93
    %v186 = vunpack.c.l.b16 %v94
    %v187 = vunpack.c.h.b16 %v94
    %v188 = vunpack.c.l.b16 %v95
    %v189 = vunpack.c.h.b16 %v95
    %v190 = vunpack.c.l.b16 %v96
    %v191 = vunpack.c.h.b16 %v96
    %v192 = vunpack.c.l.b16 %v97
    %v193 = vunpack.c.h.b16 %v97
    %v194 = vunpack.c.l.b16 %v98
    %v195 = vunpack.c.h.b16 %v98
    %v196 = vunpack.c.l.b16 %v99
    %v197 = vunpack.c.h.b16 %v99
    %v198 = vunpack.c.l.b16 %v100
    %v199 = vunpack.c.h.b16 %v100
    %v200 = vunpack.c.l.b16 %v101
    %v201 = vunpack.c.h.b16 %v101
    %v202 = vunpack.c.l.b16 %v102
    %v203 = vunpack.c.h.b16 %v102
    %v204 = vunpack.c.l.b16 %v103
    %v205 = vunpack.c.h.b16 %v103
    %v206 = vunpack.c.l.b16 %v104
    %v207 = vunpack.c.h.b16 %v104
    %v208 = vunpack.c.l.b16 %v105
    %v209 = vunpack.c.h.b16 %v105
    %v210 = vunpack.c.l.b16 %v106
    %v211 = vunpack.c.h.b16 %v106
    %v212 = vunpack.c.l.b16 %v107
    %v213 = vunpack.c.h.b16 %v107
    %v214 = vunpack.c.l.b16 %v108
    %v215 = vunpack.c.h.b16 %v108
    %v216 = vunpack.c.l.b16 %v109
    %v217 = vunpack.c.h.b16 %v109
    %v218 = vpack.c.b16 %v156, %v154
    %v219 = vpack.c.b16 %v157, %v155
    %v220 = vpack.c.b16 %v160, %v158
    %v221 = vpack.c.b16 %v161, %v159
    %v222 = vpack.c.b16 %v164, %v162
    %v223 = vpack.c.b16 %v165, %v163
    %v224 = vpack.c.b16 %v168, %v166
    %v225 = vpack.c.b16 %v169, %v167
    %v226 = vpack.c.b16 %v172, %v170
    %v227 = vpack.c.b16 %v173, %v171
    %v228 = vpack.c.b16 %v176, %v174
    %v229 = vpack.c.b16 %v177, %v175
    %v230 = vpack.c.b16 %v180, %v178
    %v231 = vpack.c.b16 %v181, %v179
    %v232 = vpack.c.b16 %v184, %v182
    %v233 = vpack.c.b16 %v185, %v183
    %v234 = vpack.c.b16 %v188, %v186
    %v235 = vpack.c.b16 %v189, %v187
    %v236 = vpack.c.b16 %v192, %v190
    %v237 = vpack.c.b16 %v193, %v191
    %v238 = vpack.c.b16 %v196, %v194
    %v239 = vpack.c.b16 %v197, %v195
    %v240 = vpack.c.b16 %v200, %v198
    %v241 = vpack.c.b16 %v201, %v199
    %v242 = vpack.c.b16 %v204, %v202
    %v243 = vpack.c.b16 %v205, %v203
    %v244 = vpack.c.b16 %v208, %v206
    %v245 = vpack.c.b16 %v209, %v207
    %v246 = vpack.c.b16 %v212, %v210
    %v247 = vpack.c.b16 %v213, %v211
    %v248 = vpack.c.b16 %v216, %v214
    %v249 = vpack.c.b16 %v217, %v215
    %282 = vmatprep.subr.bf16.mxu0 %v219
    %283 = vmatpush1.bf16.msra.mxu0 %v218
    %284 = vmatprep.subr.bf16.mxu0 %v221
    %285 = vmatpush1.bf16.msra.mxu0 %v220
    %286 = vmatprep.subr.bf16.mxu0 %v223
    %287 = vmatpush1.bf16.msra.mxu0 %v222
    %288 = vmatprep.subr.bf16.mxu0 %v225
    %289 = vmatpush1.bf16.msra.mxu0 %v224
    %290 = vmatprep.subr.bf16.mxu0 %v227
    %291 = vmatpush1.bf16.msra.mxu0 %v226
    %292 = vmatprep.subr.bf16.mxu0 %v229
    %293 = vmatpush1.bf16.msra.mxu0 %v228
    %294 = vmatprep.subr.bf16.mxu0 %v231
    %295 = vmatpush1.bf16.msra.mxu0 %v230
    %296 = vmatprep.subr.bf16.mxu0 %v233
    %297 = vmatpush1.bf16.msra.mxu0 %v232
    %298 = vmatprep.subr.bf16.mxu0 %v235
    %299 = vmatpush1.bf16.msra.mxu0 %v234
    %300 = vmatprep.subr.bf16.mxu0 %v237
    %301 = vmatpush1.bf16.msra.mxu0 %v236
    %302 = vmatprep.subr.bf16.mxu0 %v239
    %303 = vmatpush1.bf16.msra.mxu0 %v238
    %304 = vmatprep.subr.bf16.mxu0 %v241
    %305 = vmatpush1.bf16.msra.mxu0 %v240
    %306 = vmatprep.subr.bf16.mxu0 %v243
    %307 = vmatpush1.bf16.msra.mxu0 %v242
    %308 = vmatprep.subr.bf16.mxu0 %v245
    %309 = vmatpush1.bf16.msra.mxu0 %v244
    %310 = vmatprep.subr.bf16.mxu0 %v247
    %311 = vmatpush1.bf16.msra.mxu0 %v246
    %312 = vmatprep.subr.bf16.mxu0 %v249
    %313 = vmatpush1.bf16.msra.mxu0 %v248
    %314 = vmatprep.mubr.bf16.mxu0 %v77
    %315 = vmatmul.mubr.bf16.gmra.mrb[0].mxu0 %v76
    %v316 = vpop.f32.mrb[0].mxu0
    %v317 = vadd.f32 %v115, %v316
    %v318 = vpop.f32.mrb[0].mxu0
    %v319 = vadd.f32 %v119, %v318
    %v320 = vpop.f32.mrb[0].mxu0
    %v321 = vpop.f32.mrb[0].mxu0
    %322 = vdwg.mxu0
    %v323 = vadd.f32 %v74, %v317
    %v324 = vadd.f32 %v75, %v319
    %v325 = vpack.c.bf16 %v323, %v323
    %v326 = vpack.c.bf16 %v324, %v324
    %v327 = vld [vmem:[#allocation7] sm:$0xff]
    %v328 = vld [vmem:[#allocation7 + $0x8] sm:$0xff]
    %v329 = vld [vmem:[#allocation7 + $0x10] sm:$0xff]
    %v330 = vld [vmem:[#allocation7 + $0x18] sm:$0xff]
    %v331 = vld [vmem:[#allocation7 + $0x20] sm:$0xff]
    %v332 = vld [vmem:[#allocation7 + $0x28] sm:$0xff]
    %v333 = vld [vmem:[#allocation7 + $0x30] sm:$0xff]
    %v334 = vld [vmem:[#allocation7 + $0x38] sm:$0xff]
    %v335 = vld [vmem:[#allocation7 + $0x40] sm:$0xff]
    %v336 = vld [vmem:[#allocation7 + $0x48] sm:$0xff]
    %v337 = vld [vmem:[#allocation7 + $0x50] sm:$0xff]
    %v338 = vld [vmem:[#allocation7 + $0x58] sm:$0xff]
    %v339 = vld [vmem:[#allocation7 + $0x60] sm:$0xff]
    %v340 = vld [vmem:[#allocation7 + $0x68] sm:$0xff]
    %v341 = vld [vmem:[#allocation7 + $0x70] sm:$0xff]
    %v342 = vld [vmem:[#allocation7 + $0x78] sm:$0xff]
    %v343 = vld [vmem:[#allocation7 + $0x80] sm:$0xff]
    %v344 = vld [vmem:[#allocation7 + $0x88] sm:$0xff]
    %v345 = vld [vmem:[#allocation7 + $0x90] sm:$0xff]
    %v346 = vld [vmem:[#allocation7 + $0x98] sm:$0xff]
    %v347 = vld [vmem:[#allocation7 + $0xa0] sm:$0xff]
    %v348 = vld [vmem:[#allocation7 + $0xa8] sm:$0xff]
    %v349 = vld [vmem:[#allocation7 + $0xb0] sm:$0xff]
    %v350 = vld [vmem:[#allocation7 + $0xb8] sm:$0xff]
    %v351 = vld [vmem:[#allocation7 + $0xc0] sm:$0xff]
    %v352 = vld [vmem:[#allocation7 + $0xc8] sm:$0xff]
    %v353 = vld [vmem:[#allocation7 + $0xd0] sm:$0xff]
    %v354 = vld [vmem:[#allocation7 + $0xd8] sm:$0xff]
    %v355 = vld [vmem:[#allocation7 + $0xe0] sm:$0xff]
    %v356 = vld [vmem:[#allocation7 + $0xe8] sm:$0xff]
    %v357 = vld [vmem:[#allocation7 + $0xf0] sm:$0xff]
    %v358 = vld [vmem:[#allocation7 + $0xf8] sm:$0xff]
    %v359 = vld [vmem:[#allocation7 + $0x100] sm:$0xff]
    %v360 = vld [vmem:[#allocation7 + $0x108] sm:$0xff]
    %v361 = vld [vmem:[#allocation7 + $0x110] sm:$0xff]
    %v362 = vld [vmem:[#allocation7 + $0x118] sm:$0xff]
    %v363 = vld [vmem:[#allocation7 + $0x120] sm:$0xff]
    %v364 = vld [vmem:[#allocation7 + $0x128] sm:$0xff]
    %v365 = vld [vmem:[#allocation7 + $0x130] sm:$0xff]
    %v366 = vld [vmem:[#allocation7 + $0x138] sm:$0xff]
    %v367 = vld [vmem:[#allocation7 + $0x140] sm:$0xff]
    %v368 = vld [vmem:[#allocation7 + $0x148] sm:$0xff]
    %v369 = vld [vmem:[#allocation7 + $0x150] sm:$0xff]
    %v370 = vld [vmem:[#allocation7 + $0x158] sm:$0xff]
    %v371 = vld [vmem:[#allocation7 + $0x160] sm:$0xff]
    %v372 = vld [vmem:[#allocation7 + $0x168] sm:$0xff]
    %v373 = vld [vmem:[#allocation7 + $0x170] sm:$0xff]
    %v374 = vld [vmem:[#allocation7 + $0x178] sm:$0xff]
    %v375 = vld [vmem:[#allocation7 + $0x180] sm:$0xff]
    %v376 = vld [vmem:[#allocation7 + $0x188] sm:$0xff]
    %v377 = vld [vmem:[#allocation7 + $0x190] sm:$0xff]
    %v378 = vld [vmem:[#allocation7 + $0x198] sm:$0xff]
    %v379 = vld [vmem:[#allocation7 + $0x1a0] sm:$0xff]
    %v380 = vld [vmem:[#allocation7 + $0x1a8] sm:$0xff]
    %v381 = vld [vmem:[#allocation7 + $0x1b0] sm:$0xff]
    %v382 = vld [vmem:[#allocation7 + $0x1b8] sm:$0xff]
    %v383 = vld [vmem:[#allocation7 + $0x1c0] sm:$0xff]
    %v384 = vld [vmem:[#allocation7 + $0x1c8] sm:$0xff]
    %v385 = vld [vmem:[#allocation7 + $0x1d0] sm:$0xff]
    %v386 = vld [vmem:[#allocation7 + $0x1d8] sm:$0xff]
    %v387 = vld [vmem:[#allocation7 + $0x1e0] sm:$0xff]
    %v388 = vld [vmem:[#allocation7 + $0x1e8] sm:$0xff]
    %v389 = vld [vmem:[#allocation7 + $0x1f0] sm:$0xff]
    %v390 = vld [vmem:[#allocation7 + $0x1f8] sm:$0xff]
    %v455 = vunpack.c.l.b16 %v327
    %v456 = vunpack.c.h.b16 %v327
    %v457 = vunpack.c.l.b16 %v328
    %v458 = vunpack.c.h.b16 %v328
    %v459 = vunpack.c.l.b16 %v329
    %v460 = vunpack.c.h.b16 %v329
    %v461 = vunpack.c.l.b16 %v330
    %v462 = vunpack.c.h.b16 %v330
    %v463 = vunpack.c.l.b16 %v331
    %v464 = vunpack.c.h.b16 %v331
    %v465 = vunpack.c.l.b16 %v332
    %v466 = vunpack.c.h.b16 %v332
    %v467 = vunpack.c.l.b16 %v333
    %v468 = vunpack.c.h.b16 %v333
    %v469 = vunpack.c.l.b16 %v334
    %v470 = vunpack.c.h.b16 %v334
    %v471 = vunpack.c.l.b16 %v335
    %v472 = vunpack.c.h.b16 %v335
    %v473 = vunpack.c.l.b16 %v336
    %v474 = vunpack.c.h.b16 %v336
    %v475 = vunpack.c.l.b16 %v337
    %v476 = vunpack.c.h.b16 %v337
    %v477 = vunpack.c.l.b16 %v338
    %v478 = vunpack.c.h.b16 %v338
    %v479 = vunpack.c.l.b16 %v339
    %v480 = vunpack.c.h.b16 %v339
    %v481 = vunpack.c.l.b16 %v340
    %v482 = vunpack.c.h.b16 %v340
    %v483 = vunpack.c.l.b16 %v341
    %v484 = vunpack.c.h.b16 %v341
    %v485 = vunpack.c.l.b16 %v342
    %v486 = vunpack.c.h.b16 %v342
    %v487 = vunpack.c.l.b16 %v343
    %v488 = vunpack.c.h.b16 %v343
    %v489 = vunpack.c.l.b16 %v344
    %v490 = vunpack.c.h.b16 %v344
    %v491 = vunpack.c.l.b16 %v345
    %v492 = vunpack.c.h.b16 %v345
    %v493 = vunpack.c.l.b16 %v346
    %v494 = vunpack.c.h.b16 %v346
    %v495 = vunpack.c.l.b16 %v347
    %v496 = vunpack.c.h.b16 %v347
    %v497 = vunpack.c.l.b16 %v348
    %v498 = vunpack.c.h.b16 %v348
    %v499 = vunpack.c.l.b16 %v349
    %v500 = vunpack.c.h.b16 %v349
    %v501 = vunpack.c.l.b16 %v350
    %v502 = vunpack.c.h.b16 %v350
    %v503 = vunpack.c.l.b16 %v351
    %v504 = vunpack.c.h.b16 %v351
    %v505 = vunpack.c.l.b16 %v352
    %v506 = vunpack.c.h.b16 %v352
    %v507 = vunpack.c.l.b16 %v353
    %v508 = vunpack.c.h.b16 %v353
    %v509 = vunpack.c.l.b16 %v354
    %v510 = vunpack.c.h.b16 %v354
    %v511 = vunpack.c.l.b16 %v355
    %v512 = vunpack.c.h.b16 %v355
    %v513 = vunpack.c.l.b16 %v356
    %v514 = vunpack.c.h.b16 %v356
    %v515 = vunpack.c.l.b16 %v357
    %v516 = vunpack.c.h.b16 %v357
    %v517 = vunpack.c.l.b16 %v358
    %v518 = vunpack.c.h.b16 %v358
    %v519 = vunpack.c.l.b16 %v359
    %v520 = vunpack.c.h.b16 %v359
    %v521 = vunpack.c.l.b16 %v360
    %v522 = vunpack.c.h.b16 %v360
    %v523 = vunpack.c.l.b16 %v361
    %v524 = vunpack.c.h.b16 %v361
    %v525 = vunpack.c.l.b16 %v362
    %v526 = vunpack.c.h.b16 %v362
    %v527 = vunpack.c.l.b16 %v363
    %v528 = vunpack.c.h.b16 %v363
    %v529 = vunpack.c.l.b16 %v364
    %v530 = vunpack.c.h.b16 %v364
    %v531 = vunpack.c.l.b16 %v365
    %v532 = vunpack.c.h.b16 %v365
    %v533 = vunpack.c.l.b16 %v366
    %v534 = vunpack.c.h.b16 %v366
    %v535 = vunpack.c.l.b16 %v367
    %v536 = vunpack.c.h.b16 %v367
    %v537 = vunpack.c.l.b16 %v368
    %v538 = vunpack.c.h.b16 %v368
    %v539 = vunpack.c.l.b16 %v369
    %v540 = vunpack.c.h.b16 %v369
    %v541 = vunpack.c.l.b16 %v370
    %v542 = vunpack.c.h.b16 %v370
    %v543 = vunpack.c.l.b16 %v371
    %v544 = vunpack.c.h.b16 %v371
    %v545 = vunpack.c.l.b16 %v372
    %v546 = vunpack.c.h.b16 %v372
    %v547 = vunpack.c.l.b16 %v373
    %v548 = vunpack.c.h.b16 %v373
    %v549 = vunpack.c.l.b16 %v374
    %v550 = vunpack.c.h.b16 %v374
    %v551 = vunpack.c.l.b16 %v375
    %v552 = vunpack.c.h.b16 %v375
    %v553 = vunpack.c.l.b16 %v376
    %v554 = vunpack.c.h.b16 %v376
    %v555 = vunpack.c.l.b16 %v377
    %v556 = vunpack.c.h.b16 %v377
    %v557 = vunpack.c.l.b16 %v378
    %v558 = vunpack.c.h.b16 %v378
    %v559 = vunpack.c.l.b16 %v379
    %v560 = vunpack.c.h.b16 %v379
    %v561 = vunpack.c.l.b16 %v380
    %v562 = vunpack.c.h.b16 %v380
    %v563 = vunpack.c.l.b16 %v381
    %v564 = vunpack.c.h.b16 %v381
    %v565 = vunpack.c.l.b16 %v382
    %v566 = vunpack.c.h.b16 %v382
    %v567 = vunpack.c.l.b16 %v383
    %v568 = vunpack.c.h.b16 %v383
    %v569 = vunpack.c.l.b16 %v384
    %v570 = vunpack.c.h.b16 %v384
    %v571 = vunpack.c.l.b16 %v385
    %v572 = vunpack.c.h.b16 %v385
    %v573 = vunpack.c.l.b16 %v386
    %v574 = vunpack.c.h.b16 %v386
    %v575 = vunpack.c.l.b16 %v387
    %v576 = vunpack.c.h.b16 %v387
    %v577 = vunpack.c.l.b16 %v388
    %v578 = vunpack.c.h.b16 %v388
    %v579 = vunpack.c.l.b16 %v389
    %v580 = vunpack.c.h.b16 %v389
    %v581 = vunpack.c.l.b16 %v390
    %v582 = vunpack.c.h.b16 %v390
    %v583 = vpack.c.b16 %v459, %v455
    %v584 = vpack.c.b16 %v460, %v456
    %v585 = vpack.c.b16 %v461, %v457
    %v586 = vpack.c.b16 %v462, %v458
    %v587 = vpack.c.b16 %v467, %v463
    %v588 = vpack.c.b16 %v468, %v464
    %v589 = vpack.c.b16 %v469, %v465
    %v590 = vpack.c.b16 %v470, %v466
    %v591 = vpack.c.b16 %v475, %v471
    %v592 = vpack.c.b16 %v476, %v472
    %v593 = vpack.c.b16 %v477, %v473
    %v594 = vpack.c.b16 %v478, %v474
    %v595 = vpack.c.b16 %v483, %v479
    %v596 = vpack.c.b16 %v484, %v480
    %v597 = vpack.c.b16 %v485, %v481
    %v598 = vpack.c.b16 %v486, %v482
    %v599 = vpack.c.b16 %v491, %v487
    %v600 = vpack.c.b16 %v492, %v488
    %v601 = vpack.c.b16 %v493, %v489
    %v602 = vpack.c.b16 %v494, %v490
    %v603 = vpack.c.b16 %v499, %v495
    %v604 = vpack.c.b16 %v500, %v496
    %v605 = vpack.c.b16 %v501, %v497
    %v606 = vpack.c.b16 %v502, %v498
    %v607 = vpack.c.b16 %v507, %v503
    %v608 = vpack.c.b16 %v508, %v504
    %v609 = vpack.c.b16 %v509, %v505
    %v610 = vpack.c.b16 %v510, %v506
    %v611 = vpack.c.b16 %v515, %v511
    %v612 = vpack.c.b16 %v516, %v512
    %v613 = vpack.c.b16 %v517, %v513
    %v614 = vpack.c.b16 %v518, %v514
    %v615 = vpack.c.b16 %v523, %v519
    %v616 = vpack.c.b16 %v524, %v520
    %v617 = vpack.c.b16 %v525, %v521
    %v618 = vpack.c.b16 %v526, %v522
    %v619 = vpack.c.b16 %v531, %v527
    %v620 = vpack.c.b16 %v532, %v528
    %v621 = vpack.c.b16 %v533, %v529
    %v622 = vpack.c.b16 %v534, %v530
    %v623 = vpack.c.b16 %v539, %v535
    %v624 = vpack.c.b16 %v540, %v536
    %v625 = vpack.c.b16 %v541, %v537
    %v626 = vpack.c.b16 %v542, %v538
    %v627 = vpack.c.b16 %v547, %v543
    %v628 = vpack.c.b16 %v548, %v544
    %v629 = vpack.c.b16 %v549, %v545
    %v630 = vpack.c.b16 %v550, %v546
    %v631 = vpack.c.b16 %v555, %v551
    %v632 = vpack.c.b16 %v556, %v552
    %v633 = vpack.c.b16 %v557, %v553
    %v634 = vpack.c.b16 %v558, %v554
    %v635 = vpack.c.b16 %v563, %v559
    %v636 = vpack.c.b16 %v564, %v560
    %v637 = vpack.c.b16 %v565, %v561
    %v638 = vpack.c.b16 %v566, %v562
    %v639 = vpack.c.b16 %v571, %v567
    %v640 = vpack.c.b16 %v572, %v568
    %v641 = vpack.c.b16 %v573, %v569
    %v642 = vpack.c.b16 %v574, %v570
    %v643 = vpack.c.b16 %v579, %v575
    %v644 = vpack.c.b16 %v580, %v576
    %v645 = vpack.c.b16 %v581, %v577
    %v646 = vpack.c.b16 %v582, %v578
    %711 = vmatprep.subr.bf16.mxu0 %v584
    %712 = vmatpush1.bf16.msra.mxu0 %v583
    %713 = vmatprep.subr.bf16.mxu0 %v588
    %714 = vmatpush1.bf16.msra.mxu0 %v587
    %715 = vmatprep.subr.bf16.mxu0 %v592
    %716 = vmatpush1.bf16.msra.mxu0 %v591
    %717 = vmatprep.subr.bf16.mxu0 %v596
    %718 = vmatpush1.bf16.msra.mxu0 %v595
    %719 = vmatprep.subr.bf16.mxu0 %v600
    %720 = vmatpush1.bf16.msra.mxu0 %v599
    %721 = vmatprep.subr.bf16.mxu0 %v604
    %722 = vmatpush1.bf16.msra.mxu0 %v603
    %723 = vmatprep.subr.bf16.mxu0 %v608
    %724 = vmatpush1.bf16.msra.mxu0 %v607
    %725 = vmatprep.subr.bf16.mxu0 %v612
    %726 = vmatpush1.bf16.msra.mxu0 %v611
    %727 = vmatprep.subr.bf16.mxu0 %v616
    %728 = vmatpush1.bf16.msra.mxu0 %v615
    %729 = vmatprep.subr.bf16.mxu0 %v620
    %730 = vmatpush1.bf16.msra.mxu0 %v619
    %731 = vmatprep.subr.bf16.mxu0 %v624
    %732 = vmatpush1.bf16.msra.mxu0 %v623
    %733 = vmatprep.subr.bf16.mxu0 %v628
    %734 = vmatpush1.bf16.msra.mxu0 %v627
    %735 = vmatprep.subr.bf16.mxu0 %v632
    %736 = vmatpush1.bf16.msra.mxu0 %v631
    %737 = vmatprep.subr.bf16.mxu0 %v636
    %738 = vmatpush1.bf16.msra.mxu0 %v635
    %739 = vmatprep.subr.bf16.mxu0 %v640
    %740 = vmatpush1.bf16.msra.mxu0 %v639
    %741 = vmatprep.subr.bf16.mxu0 %v644
    %742 = vmatpush1.bf16.msra.mxu0 %v643
    %743 = vmatprep.mubr.bf16.mxu0 %v326
    %744 = vmatmul.mubr.bf16.gmra.mrb[0].mxu0 %v325
    %v745 = vpop.f32.mrb[0].mxu0
    %v746 = vadd.f32 0.0, %v745
    %v747 = vpop.f32.mrb[0].mxu0
    %v748 = vadd.f32 0.0, %v747
    %v749 = vpop.f32.mrb[0].mxu0
    %v750 = vpop.f32.mrb[0].mxu0
    %751 = vdwg.mxu0
    %752 = vmatprep.subr.bf16.mxu0 %v586
    %753 = vmatpush1.bf16.msra.mxu0 %v585
    %754 = vmatprep.subr.bf16.mxu0 %v590
    %755 = vmatpush1.bf16.msra.mxu0 %v589
    %756 = vmatprep.subr.bf16.mxu0 %v594
    %757 = vmatpush1.bf16.msra.mxu0 %v593
    %758 = vmatprep.subr.bf16.mxu0 %v598
    %759 = vmatpush1.bf16.msra.mxu0 %v597
    %760 = vmatprep.subr.bf16.mxu0 %v602
    %761 = vmatpush1.bf16.msra.mxu0 %v601
    %762 = vmatprep.subr.bf16.mxu0 %v606
    %763 = vmatpush1.bf16.msra.mxu0 %v605
    %764 = vmatprep.subr.bf16.mxu0 %v610
    %765 = vmatpush1.bf16.msra.mxu0 %v609
    %766 = vmatprep.subr.bf16.mxu0 %v614
    %767 = vmatpush1.bf16.msra.mxu0 %v613
    %768 = vmatprep.subr.bf16.mxu0 %v618
    %769 = vmatpush1.bf16.msra.mxu0 %v617
    %770 = vmatprep.subr.bf16.mxu0 %v622
    %771 = vmatpush1.bf16.msra.mxu0 %v621
    %772 = vmatprep.subr.bf16.mxu0 %v626
    %773 = vmatpush1.bf16.msra.mxu0 %v625
    %774 = vmatprep.subr.bf16.mxu0 %v630
    %775 = vmatpush1.bf16.msra.mxu0 %v629
    %776 = vmatprep.subr.bf16.mxu0 %v634
    %777 = vmatpush1.bf16.msra.mxu0 %v633
    %778 = vmatprep.subr.bf16.mxu0 %v638
    %779 = vmatpush1.bf16.msra.mxu0 %v637
    %780 = vmatprep.subr.bf16.mxu0 %v642
    %781 = vmatpush1.bf16.msra.mxu0 %v641
    %782 = vmatprep.subr.bf16.mxu0 %v646
    %783 = vmatpush1.bf16.msra.mxu0 %v645
    %784 = vmatprep.mubr.bf16.mxu0 %v326
    %785 = vmatmul.mubr.bf16.gmra.mrb[0].mxu0 %v325
    %v786 = vpop.f32.mrb[0].mxu0
    %v787 = vadd.f32 0.0, %v786
    %v788 = vpop.f32.mrb[0].mxu0
    %v789 = vadd.f32 0.0, %v788
    %v790 = vpop.f32.mrb[0].mxu0
    %v791 = vpop.f32.mrb[0].mxu0
    %792 = vdwg.mxu0
    %v793 = vmax.f32 %v746, 0.0
    %v794 = vmax.f32 %v748, 0.0
    %v795 = vmax.f32 %v787, 0.0
    %v796 = vmax.f32 %v789, 0.0
    %v797 = vpack.c.bf16 %v793, %v793
    %v798 = vpack.c.bf16 %v794, %v794
    %v799 = vpack.c.bf16 %v795, %v795
    %v800 = vpack.c.bf16 %v796, %v796
    %v801 = vld [vmem:[#allocation8] sm:$0xff]
    %v802 = vld [vmem:[#allocation8 + $0x8] sm:$0xff]
    %v803 = vld [vmem:[#allocation8 + $0x10] sm:$0xff]
    %v804 = vld [vmem:[#allocation8 + $0x18] sm:$0xff]
    %v805 = vld [vmem:[#allocation8 + $0x20] sm:$0xff]
    %v806 = vld [vmem:[#allocation8 + $0x28] sm:$0xff]
    %v807 = vld [vmem:[#allocation8 + $0x30] sm:$0xff]
    %v808 = vld [vmem:[#allocation8 + $0x38] sm:$0xff]
    %v809 = vld [vmem:[#allocation8 + $0x40] sm:$0xff]
    %v810 = vld [vmem:[#allocation8 + $0x48] sm:$0xff]
    %v811 = vld [vmem:[#allocation8 + $0x50] sm:$0xff]
    %v812 = vld [vmem:[#allocation8 + $0x58] sm:$0xff]
    %v813 = vld [vmem:[#allocation8 + $0x60] sm:$0xff]
    %v814 = vld [vmem:[#allocation8 + $0x68] sm:$0xff]
    %v815 = vld [vmem:[#allocation8 + $0x70] sm:$0xff]
    %v816 = vld [vmem:[#allocation8 + $0x78] sm:$0xff]
    %v817 = vld [vmem:[#allocation8 + $0x80] sm:$0xff]
    %v818 = vld [vmem:[#allocation8 + $0x88] sm:$0xff]
    %v819 = vld [vmem:[#allocation8 + $0x90] sm:$0xff]
    %v820 = vld [vmem:[#allocation8 + $0x98] sm:$0xff]
    %v821 = vld [vmem:[#allocation8 + $0xa0] sm:$0xff]
    %v822 = vld [vmem:[#allocation8 + $0xa8] sm:$0xff]
    %v823 = vld [vmem:[#allocation8 + $0xb0] sm:$0xff]
    %v824 = vld [vmem:[#allocation8 + $0xb8] sm:$0xff]
    %v825 = vld [vmem:[#allocation8 + $0xc0] sm:$0xff]
    %v826 = vld [vmem:[#allocation8 + $0xc8] sm:$0xff]
    %v827 = vld [vmem:[#allocation8 + $0xd0] sm:$0xff]
    %v828 = vld [vmem:[#allocation8 + $0xd8] sm:$0xff]
    %v829 = vld [vmem:[#allocation8 + $0xe0] sm:$0xff]
    %v830 = vld [vmem:[#allocation8 + $0xe8] sm:$0xff]
    %v831 = vld [vmem:[#allocation8 + $0xf0] sm:$0xff]
    %v832 = vld [vmem:[#allocation8 + $0xf8] sm:$0xff]
    %v833 = vld [vmem:[#allocation8 + $0x100] sm:$0xff]
    %v834 = vld [vmem:[#allocation8 + $0x108] sm:$0xff]
    %v835 = vld [vmem:[#allocation8 + $0x110] sm:$0xff]
    %v836 = vld [vmem:[#allocation8 + $0x118] sm:$0xff]
    %v837 = vld [vmem:[#allocation8 + $0x120] sm:$0xff]
    %v838 = vld [vmem:[#allocation8 + $0x128] sm:$0xff]
    %v839 = vld [vmem:[#allocation8 + $0x130] sm:$0xff]
    %v840 = vld [vmem:[#allocation8 + $0x138] sm:$0xff]
    %v841 = vld [vmem:[#allocation8 + $0x140] sm:$0xff]
    %v842 = vld [vmem:[#allocation8 + $0x148] sm:$0xff]
    %v843 = vld [vmem:[#allocation8 + $0x150] sm:$0xff]
    %v844 = vld [vmem:[#allocation8 + $0x158] sm:$0xff]
    %v845 = vld [vmem:[#allocation8 + $0x160] sm:$0xff]
    %v846 = vld [vmem:[#allocation8 + $0x168] sm:$0xff]
    %v847 = vld [vmem:[#allocation8 + $0x170] sm:$0xff]
    %v848 = vld [vmem:[#allocation8 + $0x178] sm:$0xff]
    %v849 = vld [vmem:[#allocation8 + $0x180] sm:$0xff]
    %v850 = vld [vmem:[#allocation8 + $0x188] sm:$0xff]
    %v851 = vld [vmem:[#allocation8 + $0x190] sm:$0xff]
    %v852 = vld [vmem:[#allocation8 + $0x198] sm:$0xff]
    %v853 = vld [vmem:[#allocation8 + $0x1a0] sm:$0xff]
    %v854 = vld [vmem:[#allocation8 + $0x1a8] sm:$0xff]
    %v855 = vld [vmem:[#allocation8 + $0x1b0] sm:$0xff]
    %v856 = vld [vmem:[#allocation8 + $0x1b8] sm:$0xff]
    %v857 = vld [vmem:[#allocation8 + $0x1c0] sm:$0xff]
    %v858 = vld [vmem:[#allocation8 + $0x1c8] sm:$0xff]
    %v859 = vld [vmem:[#allocation8 + $0x1d0] sm:$0xff]
    %v860 = vld [vmem:[#allocation8 + $0x1d8] sm:$0xff]
    %v861 = vld [vmem:[#allocation8 + $0x1e0] sm:$0xff]
    %v862 = vld [vmem:[#allocation8 + $0x1e8] sm:$0xff]
    %v863 = vld [vmem:[#allocation8 + $0x1f0] sm:$0xff]
    %v864 = vld [vmem:[#allocation8 + $0x1f8] sm:$0xff]
    %v929 = vunpack.c.l.b16 %v801
    %v930 = vunpack.c.h.b16 %v801
    %v931 = vunpack.c.l.b16 %v802
    %v932 = vunpack.c.h.b16 %v802
    %v933 = vunpack.c.l.b16 %v803
    %v934 = vunpack.c.h.b16 %v803
    %v935 = vunpack.c.l.b16 %v804
    %v936 = vunpack.c.h.b16 %v804
    %v937 = vunpack.c.l.b16 %v805
    %v938 = vunpack.c.h.b16 %v805
    %v939 = vunpack.c.l.b16 %v806
    %v940 = vunpack.c.h.b16 %v806
    %v941 = vunpack.c.l.b16 %v807
    %v942 = vunpack.c.h.b16 %v807
    %v943 = vunpack.c.l.b16 %v808
    %v944 = vunpack.c.h.b16 %v808
    %v945 = vunpack.c.l.b16 %v809
    %v946 = vunpack.c.h.b16 %v809
    %v947 = vunpack.c.l.b16 %v810
    %v948 = vunpack.c.h.b16 %v810
    %v949 = vunpack.c.l.b16 %v811
    %v950 = vunpack.c.h.b16 %v811
    %v951 = vunpack.c.l.b16 %v812
    %v952 = vunpack.c.h.b16 %v812
    %v953 = vunpack.c.l.b16 %v813
    %v954 = vunpack.c.h.b16 %v813
    %v955 = vunpack.c.l.b16 %v814
    %v956 = vunpack.c.h.b16 %v814
    %v957 = vunpack.c.l.b16 %v815
    %v958 = vunpack.c.h.b16 %v815
    %v959 = vunpack.c.l.b16 %v816
    %v960 = vunpack.c.h.b16 %v816
    %v961 = vunpack.c.l.b16 %v817
    %v962 = vunpack.c.h.b16 %v817
    %v963 = vunpack.c.l.b16 %v818
    %v964 = vunpack.c.h.b16 %v818
    %v965 = vunpack.c.l.b16 %v819
    %v966 = vunpack.c.h.b16 %v819
    %v967 = vunpack.c.l.b16 %v820
    %v968 = vunpack.c.h.b16 %v820
    %v969 = vunpack.c.l.b16 %v821
    %v970 = vunpack.c.h.b16 %v821
    %v971 = vunpack.c.l.b16 %v822
    %v972 = vunpack.c.h.b16 %v822
    %v973 = vunpack.c.l.b16 %v823
    %v974 = vunpack.c.h.b16 %v823
    %v975 = vunpack.c.l.b16 %v824
    %v976 = vunpack.c.h.b16 %v824
    %v977 = vunpack.c.l.b16 %v825
    %v978 = vunpack.c.h.b16 %v825
    %v979 = vunpack.c.l.b16 %v826
    %v980 = vunpack.c.h.b16 %v826
    %v981 = vunpack.c.l.b16 %v827
    %v982 = vunpack.c.h.b16 %v827
    %v983 = vunpack.c.l.b16 %v828
    %v984 = vunpack.c.h.b16 %v828
    %v985 = vunpack.c.l.b16 %v829
    %v986 = vunpack.c.h.b16 %v829
    %v987 = vunpack.c.l.b16 %v830
    %v988 = vunpack.c.h.b16 %v830
    %v989 = vunpack.c.l.b16 %v831
    %v990 = vunpack.c.h.b16 %v831
    %v991 = vunpack.c.l.b16 %v832
    %v992 = vunpack.c.h.b16 %v832
    %v993 = vunpack.c.l.b16 %v833
    %v994 = vunpack.c.h.b16 %v833
    %v995 = vunpack.c.l.b16 %v834
    %v996 = vunpack.c.h.b16 %v834
    %v997 = vunpack.c.l.b16 %v835
    %v998 = vunpack.c.h.b16 %v835
    %v999 = vunpack.c.l.b16 %v836
    %v1000 = vunpack.c.h.b16 %v836
    %v1001 = vunpack.c.l.b16 %v837
    %v1002 = vunpack.c.h.b16 %v837
    %v1003 = vunpack.c.l.b16 %v838
    %v1004 = vunpack.c.h.b16 %v838
    %v1005 = vunpack.c.l.b16 %v839
    %v1006 = vunpack.c.h.b16 %v839
    %v1007 = vunpack.c.l.b16 %v840
    %v1008 = vunpack.c.h.b16 %v840
    %v1009 = vunpack.c.l.b16 %v841
    %v1010 = vunpack.c.h.b16 %v841
    %v1011 = vunpack.c.l.b16 %v842
    %v1012 = vunpack.c.h.b16 %v842
    %v1013 = vunpack.c.l.b16 %v843
    %v1014 = vunpack.c.h.b16 %v843
    %v1015 = vunpack.c.l.b16 %v844
    %v1016 = vunpack.c.h.b16 %v844
    %v1017 = vunpack.c.l.b16 %v845
    %v1018 = vunpack.c.h.b16 %v845
    %v1019 = vunpack.c.l.b16 %v846
    %v1020 = vunpack.c.h.b16 %v846
    %v1021 = vunpack.c.l.b16 %v847
    %v1022 = vunpack.c.h.b16 %v847
    %v1023 = vunpack.c.l.b16 %v848
    %v1024 = vunpack.c.h.b16 %v848
    %v1025 = vunpack.c.l.b16 %v849
    %v1026 = vunpack.c.h.b16 %v849
    %v1027 = vunpack.c.l.b16 %v850
    %v1028 = vunpack.c.h.b16 %v850
    %v1029 = vunpack.c.l.b16 %v851
    %v1030 = vunpack.c.h.b16 %v851
    %v1031 = vunpack.c.l.b16 %v852
    %v1032 = vunpack.c.h.b16 %v852
    %v1033 = vunpack.c.l.b16 %v853
    %v1034 = vunpack.c.h.b16 %v853
    %v1035 = vunpack.c.l.b16 %v854
    %v1036 = vunpack.c.h.b16 %v854
    %v1037 = vunpack.c.l.b16 %v855
    %v1038 = vunpack.c.h.b16 %v855
    %v1039 = vunpack.c.l.b16 %v856
    %v1040 = vunpack.c.h.b16 %v856
    %v1041 = vunpack.c.l.b16 %v857
    %v1042 = vunpack.c.h.b16 %v857
    %v1043 = vunpack.c.l.b16 %v858
    %v1044 = vunpack.c.h.b16 %v858
    %v1045 = vunpack.c.l.b16 %v859
    %v1046 = vunpack.c.h.b16 %v859
    %v1047 = vunpack.c.l.b16 %v860
    %v1048 = vunpack.c.h.b16 %v860
    %v1049 = vunpack.c.l.b16 %v861
    %v1050 = vunpack.c.h.b16 %v861
    %v1051 = vunpack.c.l.b16 %v862
    %v1052 = vunpack.c.h.b16 %v862
    %v1053 = vunpack.c.l.b16 %v863
    %v1054 = vunpack.c.h.b16 %v863
    %v1055 = vunpack.c.l.b16 %v864
    %v1056 = vunpack.c.h.b16 %v864
    %v1057 = vpack.c.b16 %v931, %v929
    %v1058 = vpack.c.b16 %v932, %v930
    %v1059 = vpack.c.b16 %v935, %v933
    %v1060 = vpack.c.b16 %v936, %v934
    %v1061 = vpack.c.b16 %v939, %v937
    %v1062 = vpack.c.b16 %v940, %v938
    %v1063 = vpack.c.b16 %v943, %v941
    %v1064 = vpack.c.b16 %v944, %v942
    %v1065 = vpack.c.b16 %v947, %v945
    %v1066 = vpack.c.b16 %v948, %v946
    %v1067 = vpack.c.b16 %v951, %v949
    %v1068 = vpack.c.b16 %v952, %v950
    %v1069 = vpack.c.b16 %v955, %v953
    %v1070 = vpack.c.b16 %v956, %v954
    %v1071 = vpack.c.b16 %v959, %v957
    %v1072 = vpack.c.b16 %v960, %v958
    %v1073 = vpack.c.b16 %v963, %v961
    %v1074 = vpack.c.b16 %v964, %v962
    %v1075 = vpack.c.b16 %v967, %v965
    %v1076 = vpack.c.b16 %v968, %v966
    %v1077 = vpack.c.b16 %v971, %v969
    %v1078 = vpack.c.b16 %v972, %v970
    %v1079 = vpack.c.b16 %v975, %v973
    %v1080 = vpack.c.b16 %v976, %v974
    %v1081 = vpack.c.b16 %v979, %v977
    %v1082 = vpack.c.b16 %v980, %v978
    %v1083 = vpack.c.b16 %v983, %v981
    %v1084 = vpack.c.b16 %v984, %v982
    %v1085 = vpack.c.b16 %v987, %v985
    %v1086 = vpack.c.b16 %v988, %v986
    %v1087 = vpack.c.b16 %v991, %v989
    %v1088 = vpack.c.b16 %v992, %v990
    %v1089 = vpack.c.b16 %v995, %v993
    %v1090 = vpack.c.b16 %v996, %v994
    %v1091 = vpack.c.b16 %v999, %v997
    %v1092 = vpack.c.b16 %v1000, %v998
    %v1093 = vpack.c.b16 %v1003, %v1001
    %v1094 = vpack.c.b16 %v1004, %v1002
    %v1095 = vpack.c.b16 %v1007, %v1005
    %v1096 = vpack.c.b16 %v1008, %v1006
    %v1097 = vpack.c.b16 %v1011, %v1009
    %v1098 = vpack.c.b16 %v1012, %v1010
    %v1099 = vpack.c.b16 %v1015, %v1013
    %v1100 = vpack.c.b16 %v1016, %v1014
    %v1101 = vpack.c.b16 %v1019, %v1017
    %v1102 = vpack.c.b16 %v1020, %v1018
    %v1103 = vpack.c.b16 %v1023, %v1021
    %v1104 = vpack.c.b16 %v1024, %v1022
    %v1105 = vpack.c.b16 %v1027, %v1025
    %v1106 = vpack.c.b16 %v1028, %v1026
    %v1107 = vpack.c.b16 %v1031, %v1029
    %v1108 = vpack.c.b16 %v1032, %v1030
    %v1109 = vpack.c.b16 %v1035, %v1033
    %v1110 = vpack.c.b16 %v1036, %v1034
    %v1111 = vpack.c.b16 %v1039, %v1037
    %v1112 = vpack.c.b16 %v1040, %v1038
    %v1113 = vpack.c.b16 %v1043, %v1041
    %v1114 = vpack.c.b16 %v1044, %v1042
    %v1115 = vpack.c.b16 %v1047, %v1045
    %v1116 = vpack.c.b16 %v1048, %v1046
    %v1117 = vpack.c.b16 %v1051, %v1049
    %v1118 = vpack.c.b16 %v1052, %v1050
    %v1119 = vpack.c.b16 %v1055, %v1053
    %v1120 = vpack.c.b16 %v1056, %v1054
    %1185 = vmatprep.subr.bf16.mxu0 %v1058
    %1186 = vmatpush1.bf16.msra.mxu0 %v1057
    %1187 = vmatprep.subr.bf16.mxu0 %v1060
    %1188 = vmatpush1.bf16.msra.mxu0 %v1059
    %1189 = vmatprep.subr.bf16.mxu0 %v1062
    %1190 = vmatpush1.bf16.msra.mxu0 %v1061
    %1191 = vmatprep.subr.bf16.mxu0 %v1064
    %1192 = vmatpush1.bf16.msra.mxu0 %v1063
    %1193 = vmatprep.subr.bf16.mxu0 %v1066
    %1194 = vmatpush1.bf16.msra.mxu0 %v1065
    %1195 = vmatprep.subr.bf16.mxu0 %v1068
    %1196 = vmatpush1.bf16.msra.mxu0 %v1067
    %1197 = vmatprep.subr.bf16.mxu0 %v1070
    %1198 = vmatpush1.bf16.msra.mxu0 %v1069
    %1199 = vmatprep.subr.bf16.mxu0 %v1072
    %1200 = vmatpush1.bf16.msra.mxu0 %v1071
    %1201 = vmatprep.subr.bf16.mxu0 %v1074
    %1202 = vmatpush1.bf16.msra.mxu0 %v1073
    %1203 = vmatprep.subr.bf16.mxu0 %v1076
    %1204 = vmatpush1.bf16.msra.mxu0 %v1075
    %1205 = vmatprep.subr.bf16.mxu0 %v1078
    %1206 = vmatpush1.bf16.msra.mxu0 %v1077
    %1207 = vmatprep.subr.bf16.mxu0 %v1080
    %1208 = vmatpush1.bf16.msra.mxu0 %v1079
    %1209 = vmatprep.subr.bf16.mxu0 %v1082
    %1210 = vmatpush1.bf16.msra.mxu0 %v1081
    %1211 = vmatprep.subr.bf16.mxu0 %v1084
    %1212 = vmatpush1.bf16.msra.mxu0 %v1083
    %1213 = vmatprep.subr.bf16.mxu0 %v1086
    %1214 = vmatpush1.bf16.msra.mxu0 %v1085
    %1215 = vmatprep.subr.bf16.mxu0 %v1088
    %1216 = vmatpush1.bf16.msra.mxu0 %v1087
    %1217 = vmatprep.mubr.bf16.mxu0 %v798
    %1218 = vmatmul.mubr.bf16.gmra.mrb[0].mxu0 %v797
    %v1219 = vpop.f32.mrb[0].mxu0
    %v1220 = vadd.f32 0.0, %v1219
    %v1221 = vpop.f32.mrb[0].mxu0
    %v1222 = vadd.f32 0.0, %v1221
    %v1223 = vpop.f32.mrb[0].mxu0
    %v1224 = vpop.f32.mrb[0].mxu0
    %1225 = vdwg.mxu0
    %1226 = vmatprep.subr.bf16.mxu0 %v1090
    %1227 = vmatpush1.bf16.msra.mxu0 %v1089
    %1228 = vmatprep.subr.bf16.mxu0 %v1092
    %1229 = vmatpush1.bf16.msra.mxu0 %v1091
    %1230 = vmatprep.subr.bf16.mxu0 %v1094
    %1231 = vmatpush1.bf16.msra.mxu0 %v1093
    %1232 = vmatprep.subr.bf16.mxu0 %v1096
    %1233 = vmatpush1.bf16.msra.mxu0 %v1095
    %1234 = vmatprep.subr.bf16.mxu0 %v1098
    %1235 = vmatpush1.bf16.msra.mxu0 %v1097
    %1236 = vmatprep.subr.bf16.mxu0 %v1100
    %1237 = vmatpush1.bf16.msra.mxu0 %v1099
    %1238 = vmatprep.subr.bf16.mxu0 %v1102
    %1239 = vmatpush1.bf16.msra.mxu0 %v1101
    %1240 = vmatprep.subr.bf16.mxu0 %v1104
    %1241 = vmatpush1.bf16.msra.mxu0 %v1103
    %1242 = vmatprep.subr.bf16.mxu0 %v1106
    %1243 = vmatpush1.bf16.msra.mxu0 %v1105
    %1244 = vmatprep.subr.bf16.mxu0 %v1108
    %1245 = vmatpush1.bf16.msra.mxu0 %v1107
    %1246 = vmatprep.subr.bf16.mxu0 %v1110
    %1247 = vmatpush1.bf16.msra.mxu0 %v1109
    %1248 = vmatprep.subr.bf16.mxu0 %v1112
    %1249 = vmatpush1.bf16.msra.mxu0 %v1111
    %1250 = vmatprep.subr.bf16.mxu0 %v1114
    %1251 = vmatpush1.bf16.msra.mxu0 %v1113
    %1252 = vmatprep.subr.bf16.mxu0 %v1116
    %1253 = vmatpush1.bf16.msra.mxu0 %v1115
    %1254 = vmatprep.subr.bf16.mxu0 %v1118
    %1255 = vmatpush1.bf16.msra.mxu0 %v1117
    %1256 = vmatprep.subr.bf16.mxu0 %v1120
    %1257 = vmatpush1.bf16.msra.mxu0 %v1119
    %1258 = vmatprep.mubr.bf16.mxu0 %v800
    %1259 = vmatmul.mubr.bf16.gmra.mrb[0].mxu0 %v799
    %v1260 = vpop.f32.mrb[0].mxu0
    %v1261 = vadd.f32 %v1220, %v1260
    %v1262 = vpop.f32.mrb[0].mxu0
    %v1263 = vadd.f32 %v1222, %v1262
    %v1264 = vpop.f32.mrb[0].mxu0
    %v1265 = vpop.f32.mrb[0].mxu0
    %1266 = vdwg.mxu0
    %v1267 = vadd.f32 %v323, %v1261
    %v1268 = vadd.f32 %v324, %v1263
    %1269 = vst [vmem:[#allocation10] sm:$0xff] %v1267
    %1270 = vst [vmem:[#allocation10 + $0x8] sm:$0xff] %v1268
    // Predicated region
    $region38: #{tpu_custom_call.1} parent=1 // pred_check
      _
    $region39: #{tpu_custom_call.1} parent=1 // pred_check_branch
      %1272 = sbr.rel (0) target = $region41
    $region40: #{tpu_custom_call.1} parent=1 // pred_region
      %s1274 = ssub.s32 256, 256
      %1275 = vsyncadd [#allocation4], %s1274
      %s1277 = sshll.u32 [#allocation10], 4
      %s1278 = int_to_ptr.vmem [resolvable:$true] %s1277
      %1280 = dma.vmem_to_hbm [thread:$0]  %s1278, 256, %s5, [#allocation4]
    $region41: #{tpu_custom_call.1} parent=1 // pred_fallthru
      _
    // Predicated region
    $region42: #{tpu_custom_call.1} parent=1 // pred_check
      _
    $region43: #{tpu_custom_call.1} parent=1 // pred_check_branch
      %1282 = sbr.rel (0) target = $region45
    $region44: #{tpu_custom_call.1} parent=1 // pred_region
      %1283 = dma.done [#allocation4], 256
    $region45: #{tpu_custom_call.1} parent=1 // pred_fallthru
      _
    %1284 = vsyncpa [#allocation3], 1
    %1285 = vsyncpa [#allocation6], 1
    %1286 = vsyncpa [#allocation9], 1
    %1287 = vsyncpa [#allocation4], 1

</llo_original>
